<compile_context>
chip_gen: v5e
topology: v5e:2x2
jax: 0.10.0
libtpu: 0.0.40
codegen_flags: <defaults>
</compile_context>

<pallas_src>
import functools

import numpy as np
import jax
import jax.numpy as jnp
from jax.experimental import pallas as pl
from jax.experimental.pallas import tpu as pltpu


# ---------------------------------------------------------------------------
# Trace-time glue: output-size logic (torchvision F.resize semantics) and the
# separable antialiased-bilinear weight matrices (PIL-style triangle filter).
# ---------------------------------------------------------------------------
def _compute_output_size(h, w, size, max_size=None):
    if isinstance(size, int):
        size = [size]
    if len(size) == 2:
        if max_size is not None:
            raise ValueError("max_size is only supported when size is an int / len-1 sequence.")
        return int(size[0]), int(size[1])
    s = int(size[0])
    short, long = (h, w) if h <= w else (w, h)
    new_short, new_long = s, int(s * long / short)
    if max_size is not None:
        if max_size <= s:
            raise ValueError("max_size must be greater than size.")
        if new_long > max_size:
            new_short = int(max_size * new_short / new_long)
            new_long = max_size
    return (new_short, new_long) if h <= w else (new_long, new_short)


def _bilinear_antialias_weights(in_size, out_size, antialias=True):
    """(out_size, in_size) row-stochastic resize matrix (antialias bilinear)."""
    scale = in_size / out_size
    filterscale = scale if (antialias and scale > 1.0) else 1.0
    support = 1.0 * filterscale  # triangle filter support == 1

    i = np.arange(out_size, dtype=np.float64)
    center = (i + 0.5) * scale
    xmin = np.clip(np.floor(center - support + 0.5).astype(np.int64), 0, None)
    xmax = np.clip(np.floor(center + support + 0.5).astype(np.int64), None, in_size)

    j = np.arange(in_size, dtype=np.float64)
    x = (j[None, :] + 0.5 - center[:, None]) / filterscale
    wgt = np.clip(1.0 - np.abs(x), 0.0, None)                       # triangle kernel
    mask = (j[None, :] >= xmin[:, None]) & (j[None, :] < xmax[:, None])
    wgt = np.where(mask, wgt, 0.0)
    wsum = wgt.sum(axis=1, keepdims=True)
    wgt = np.where(wsum != 0.0, wgt / np.where(wsum == 0.0, 1.0, wsum), wgt)
    # TODO(synk): window edges may differ by one tap from PIL/torchvision at
    # image borders; a cross-check against torchvision is out of scope here.
    return wgt.astype(np.float32)


# ---------------------------------------------------------------------------
# Pallas kernel: TP planes per grid step -> TP resized planes.
#   out_p = W_h @ x_p @ W_w^T
# Both passes are single flattened (TP*dim, k) @ (k, dim_out) MXU matmuls; the
# axis swap between passes is an XLU transpose of the intermediate.
# ---------------------------------------------------------------------------
def _resize_block_kernel(wht_ref, wwt_ref, x_ref, o_ref, *,
                         height_first, op_dtype,
                         round_and_clamp, clamp_min, clamp_max):
    tp, h, w = x_ref.shape
    h_out = wht_ref.shape[1]
    w_out = wwt_ref.shape[1]

    op_dtype = jnp.dtype(op_dtype)
    bf16_ops = op_dtype == jnp.dtype(jnp.bfloat16)

    x = x_ref[...].astype(op_dtype)            # cast AFTER the dtype-narrow DMA
    wht = wht_ref[...]                         # (H, Hout)  f32 (exactly normalized)
    wwt = wwt_ref[...]                         # (W, Wout)  f32
    if bf16_ops:                               # opt-in bf16 MXU operands
        wht = wht.astype(op_dtype)
        wwt = wwt.astype(op_dtype)

    def mm(a, b):
        # Single big MXU matmul with f32 accumulation.  The lhs is only
        # downcast when bf16 operands were explicitly requested; otherwise the
        # f32 inter-pass intermediate is kept (no precision cliff).
        if bf16_ops:
            a = a.astype(op_dtype)
        return jnp.dot(a, b, preferred_element_type=jnp.float32)

    if height_first:
        # Pass 1 (height): x (TP,H,W) -> (TP,W,H) -> (TP*W, H) @ (H, Hout)
        xt = jnp.transpose(x, (0, 2, 1)).reshape(tp * w, h)
        t1 = mm(xt, wht)                                               # (TP*W, Hout) f32
        # swap axes for pass 2: (TP, W, Hout) -> (TP, Hout, W) -> (TP*Hout, W)
        t1 = jnp.transpose(t1.reshape(tp, w, h_out), (0, 2, 1)).reshape(tp * h_out, w)
        # Pass 2 (width): (TP*Hout, W) @ (W, Wout)
        out = mm(t1, wwt).reshape(tp, h_out, w_out)                    # f32
    else:
        # Pass 1 (width): (TP*H, W) @ (W, Wout)
        t1 = mm(x.reshape(tp * h, w), wwt)                             # (TP*H, Wout) f32
        # swap axes for pass 2: (TP, H, Wout) -> (TP, Wout, H) -> (TP*Wout, H)
        t1 = jnp.transpose(t1.reshape(tp, h, w_out), (0, 2, 1)).reshape(tp * w_out, h)
        # Pass 2 (height): (TP*Wout, H) @ (H, Hout)
        out = mm(t1, wht).reshape(tp, w_out, h_out)                    # f32
        out = jnp.transpose(out, (0, 2, 1))                            # (TP, Hout, Wout)

    if round_and_clamp:                        # integer video dtypes (e.g. uint8)
        out = jnp.clip(jnp.round(out), clamp_min, clamp_max)
    o_ref[...] = out.astype(o_ref.dtype)


# ---------------------------------------------------------------------------
# Generation-aware VMEM sizing + planes-per-step selection.
# ---------------------------------------------------------------------------
def _vmem_limits():
    """(vmem_limit_bytes, tp_budget_bytes) derived from the chip's VMEM size."""
    try:
        cap = int(pltpu.get_tpu_info().vmem_capacity_bytes)
    except Exception:
        cap = 64 * 1024 * 1024                 # conservative fallback (v7x-sized)
    limit = min((3 * cap) // 4, 100 * 1024 * 1024)   # ~96 MiB v5e/v6e, 48 MiB v7x
    budget = min((9 * cap) // 16, 72 * 1024 * 1024)  # ~72 MiB v5e/v6e, 36 MiB v7x
    return limit, budget


def _choose_planes_per_step(n, h, w, h_out, w_out, in_bytes, out_bytes, op_bytes,
                            vmem_budget, fixed_bytes, max_tp=256):
    """Largest TP dividing n that fits the budget and keeps >=2 steps per core."""
    inter = min(h * w_out, h_out * w)
    per_plane = (
        2 * h * w * in_bytes                   # double-buffered input block
        + 2 * h_out * w_out * out_bytes        # double-buffered output block
        + h * w * op_bytes                     # compute-dtype copy of the input
        + h * w * op_bytes                     # transposed input copy (height-first)
        + inter * 4                            # f32 pass-1 result
        + inter * (4 + op_bytes)               # transposed / recast pass-1 result
        + 2 * h_out * w_out * 4                # f32 pass-2 result (+ transposed copy)
    )
    budget = max(int(vmem_budget) - int(fixed_bytes), per_plane)
    cap = max(1, budget // per_plane)
    cap = min(cap, max_tp)
    if n >= 4:
        cap = min(cap, n // 4)                 # >=2 grid steps per core (2-core v7x)
    elif n >= 2:
        cap = min(cap, n // 2)
    cap = max(int(cap), 1)
    best = 1
    for d in range(1, cap + 1):
        if n % d == 0:
            best = d
    return best


def _pallas_resize_planes(planes, wh_t, ww_t, *, height_first, op_dtype,
                          round_and_clamp, clamp_min, clamp_max):
    n, h, w = planes.shape
    h_out = wh_t.shape[1]
    w_out = ww_t.shape[1]
    out_dtype = planes.dtype
    in_bytes = jnp.dtype(planes.dtype).itemsize
    out_bytes = jnp.dtype(out_dtype).itemsize
    op_bytes = jnp.dtype(op_dtype).itemsize

    vmem_limit, vmem_budget = _vmem_limits()
    weight_bytes = (h * h_out + w * w_out) * 4         # f32, single-buffered
    tp = _choose_planes_per_step(n, h, w, h_out, w_out, in_bytes, out_bytes,
                                 op_bytes, vmem_budget=vmem_budget,
                                 fixed_bytes=weight_bytes)

    kernel = functools.partial(
        _resize_block_kernel,
        height_first=height_first, op_dtype=jnp.dtype(op_dtype),
        round_and_clamp=round_and_clamp, clamp_min=clamp_min, clamp_max=clamp_max)

    if height_first:
        mm_flops = 2 * n * (w * h * h_out + h_out * w * w_out)
    else:
        mm_flops = 2 * n * (h * w * w_out + w_out * h * h_out)
    cost = pl.CostEstimate(
        flops=int(mm_flops),
        transcendentals=0,
        bytes_accessed=int(n * h * w * in_bytes
                           + n * h_out * w_out * out_bytes
                           + weight_bytes))

    return pl.pallas_call(
        kernel,
        out_shape=jax.ShapeDtypeStruct((n, h_out, w_out), out_dtype),
        grid=(n // tp,),
        in_specs=[
            # Weights: constant index_map -> resident, single-buffered.
            pl.BlockSpec((h, h_out), lambda i: (0, 0), pipeline_mode=pl.Buffered(1)),
            pl.BlockSpec((w, w_out), lambda i: (0, 0), pipeline_mode=pl.Buffered(1)),
            # TP input planes per grid step (dtype-narrow DMA).
            pl.BlockSpec((tp, h, w), lambda i: (i, 0, 0)),
        ],
        out_specs=pl.BlockSpec((tp, h_out, w_out), lambda i: (i, 0, 0)),
        compiler_params=pltpu.CompilerParams(
            dimension_semantics=("parallel",),
            vmem_limit_bytes=int(vmem_limit)),
        cost_estimate=cost,
    )(wh_t, ww_t, planes)


# ---------------------------------------------------------------------------
# Module-equivalent wrapper (forward pass of BatchVideoResize).
# ---------------------------------------------------------------------------
def batch_video_resize(videos, size, max_size=None, antialias=True,
                       video_format="CTHW", use_bf16_matmul=False):
    if videos.ndim != 5:
        raise ValueError("Expected a batch of videos with 5 dims [B, ..., H, W].")
    if video_format.upper() not in ("CTHW", "TCHW"):
        raise ValueError(f"Unknown video_format {video_format}.")

    b, d1, d2, h, w = videos.shape            # (T, C) order is irrelevant to the math
    h_out, w_out = _compute_output_size(h, w, size, max_size)

    in_dtype = videos.dtype
    # torchvision upcasts to f32 for resize; keep f32 compute by default.
    # bf16 MXU operands (f32 accumulation) are an explicit opt-in for speed.
    op_dtype = jnp.bfloat16 if use_bf16_matmul else jnp.float32

    # Weight matrices stay f32 (exact row normalization); transposed so both
    # passes are plain (data @ weight) matmuls in the kernel.
    wh_t = jnp.asarray(_bilinear_antialias_weights(h, h_out, antialias).T,
                       dtype=jnp.float32)                               # (H, Hout)
    ww_t = jnp.asarray(_bilinear_antialias_weights(w, w_out, antialias).T,
                       dtype=jnp.float32)                               # (W, Wout)

    is_int = jnp.issubdtype(in_dtype, jnp.integer)
    clamp_min = float(jnp.iinfo(in_dtype).min) if is_int else 0.0
    clamp_max = float(jnp.iinfo(in_dtype).max) if is_int else 0.0

    # Pass-order heuristic: minimize total MXU FLOPs / intermediate size.
    height_first = w * h_out * (h + w_out) <= h * w_out * (w + h_out)

    # Free reshape — no transpose, no dtype change, no extra HBM traffic.
    planes = videos.reshape(b * d1 * d2, h, w)
    out_planes = _pallas_resize_planes(
        planes, wh_t, ww_t,
        height_first=height_first, op_dtype=op_dtype,
        round_and_clamp=is_int, clamp_min=clamp_min, clamp_max=clamp_max)

    return out_planes.reshape(b, d1, d2, h_out, w_out)


if __name__ == "__main__":
    key = jax.random.PRNGKey(0)
    k_f, k_i = jax.random.split(key)
    B, C, T, H, W = 2, 4, 3, 16, 16
    videos = jax.random.normal(k_f, (B, C, T, H, W), dtype=jnp.float32)

    # Exercise both pass orders (height-first and width-first).
    for size in [(8, 12), (12, 8)]:
        out = batch_video_resize(videos, size=size, antialias=True, video_format="CTHW")
        out = jax.block_until_ready(out)
        assert out.shape == (B, C, T, size[0], size[1]), out.shape

        wh = jnp.asarray(_bilinear_antialias_weights(H, size[0]))
        ww = jnp.asarray(_bilinear_antialias_weights(W, size[1]))
        ref = jnp.einsum("oh,nhw,pw->nop", wh, videos.reshape(B * C * T, H, W), ww)
        ref = ref.reshape(B, C, T, *size)
        assert np.allclose(np.asarray(out), np.asarray(ref), rtol=1e-4, atol=1e-4)

    # Integer (uint8) path: round + clamp in-kernel, uint8 in/out HBM traffic.
    videos_u8 = jax.random.randint(k_i, (B, C, T, H, W), 0, 256,
                                   dtype=jnp.int32).astype(jnp.uint8)
    out_u8 = jax.block_until_ready(
        batch_video_resize(videos_u8, size=(8, 12), antialias=True))
    wh = jnp.asarray(_bilinear_antialias_weights(H, 8))
    ww = jnp.asarray(_bilinear_antialias_weights(W, 12))
    ref_u8 = jnp.einsum("oh,nhw,pw->nop", wh,
                        videos_u8.reshape(B * C * T, H, W).astype(jnp.float32), ww)
    ref_u8 = jnp.clip(jnp.round(ref_u8), 0, 255).reshape(B, C, T, 8, 12)
    diff = np.abs(np.asarray(out_u8, dtype=np.int32) - np.asarray(ref_u8, dtype=np.int32))
    assert diff.max() <= 1, diff.max()

    print("KERNEL_OK")
</pallas_src>

<mosaic_0001>
module attributes {stable_mosaic.version = 11 : i64} {
  func.func @_resize_block_kernel(%arg0: i32, %arg1: memref<16x8xf32, #tpu.memory_space<vmem>>, %arg2: memref<16x12xf32, #tpu.memory_space<vmem>>, %arg3: memref<6x16x16xf32, #tpu.memory_space<vmem>>, %arg4: memref<6x8x12xf32, #tpu.memory_space<vmem>>) attributes {dimension_semantics = [#tpu.dimension_semantics<parallel>], iteration_bounds = array<i64: 4>, scalar_prefetch = 0 : i64, scratch_operands = 0 : i64, tpu.core_type = #tpu.core_type<tc>, window_params = [{pipeline_mode = #tpu.pipeline_mode<synchronous>, transform_indices = @transform_0, window_bounds = array<i64: 16, 8>}, {pipeline_mode = #tpu.pipeline_mode<synchronous>, transform_indices = @transform_1, window_bounds = array<i64: 16, 12>}, {transform_indices = @transform_2, window_bounds = array<i64: 6, 16, 16>}, {transform_indices = @transform_3, window_bounds = array<i64: 6, 8, 12>}]} {
    %c0 = arith.constant 0 : index
    %c0_0 = arith.constant 0 : index
    %c0_1 = arith.constant 0 : index
    %0 = vector.load %arg3[%c0, %c0_0, %c0_1] : memref<6x16x16xf32, #tpu.memory_space<vmem>>, vector<6x16x16xf32>
    %c0_2 = arith.constant 0 : index
    %c0_3 = arith.constant 0 : index
    %1 = vector.load %arg1[%c0_2, %c0_3] : memref<16x8xf32, #tpu.memory_space<vmem>>, vector<16x8xf32>
    %c0_4 = arith.constant 0 : index
    %c0_5 = arith.constant 0 : index
    %2 = vector.load %arg2[%c0_4, %c0_5] : memref<16x12xf32, #tpu.memory_space<vmem>>, vector<16x12xf32>
    %3 = tpu.transpose %0, [0, 2, 1] : vector<6x16x16xf32> -> vector<6x16x16xf32>
    %4 = vector.shape_cast %3 : vector<6x16x16xf32> to vector<96x16xf32>
    %cst = arith.constant dense<0.000000e+00> : vector<96x8xf32>
    %5 = tpu.matmul %4, %1, %cst {dimension_numbers = #tpu.dot_dimension_numbers<[1], [0], [0], [1], [0, 0, 1, 1], [], []>} : vector<96x16xf32>, vector<16x8xf32>, vector<96x8xf32> -> vector<96x8xf32>
    %6 = vector.shape_cast %5 : vector<96x8xf32> to vector<6x16x8xf32>
    %7 = tpu.transpose %6, [0, 2, 1] : vector<6x16x8xf32> -> vector<6x8x16xf32>
    %8 = vector.shape_cast %7 : vector<6x8x16xf32> to vector<48x16xf32>
    %cst_6 = arith.constant dense<0.000000e+00> : vector<48x12xf32>
    %9 = tpu.matmul %8, %2, %cst_6 {dimension_numbers = #tpu.dot_dimension_numbers<[1], [0], [0], [1], [0, 0, 1, 1], [], []>} : vector<48x16xf32>, vector<16x12xf32>, vector<48x12xf32> -> vector<48x12xf32>
    %10 = vector.shape_cast %9 : vector<48x12xf32> to vector<6x8x12xf32>
    %c0_7 = arith.constant 0 : index
    %c0_8 = arith.constant 0 : index
    %c0_9 = arith.constant 0 : index
    %11 = vector.load %arg4[%c0_7, %c0_8, %c0_9] : memref<6x8x12xf32, #tpu.memory_space<vmem>>, vector<6x8x12xf32>
    tpu.vector_store %arg4[%c0_7, %c0_8, %c0_9], %10 {strides = array<i32>} : memref<6x8x12xf32, #tpu.memory_space<vmem>>, vector<6x8x12xf32>,
    return
  }
  func.func @transform_0(%arg0: i32) -> (i32, i32) {
    %c0_i32 = arith.constant 0 : i32
    %c0_i32_0 = arith.constant 0 : i32
    %c0_i32_1 = arith.constant 0 : i32
    return %c0_i32, %c0_i32_0 : i32, i32
  }
  func.func @transform_1(%arg0: i32) -> (i32, i32) {
    %c0_i32 = arith.constant 0 : i32
    %c0_i32_0 = arith.constant 0 : i32
    %c0_i32_1 = arith.constant 0 : i32
    return %c0_i32, %c0_i32_0 : i32, i32
  }
  func.func @transform_2(%arg0: i32) -> (i32, i32, i32) {
    %c0_i32 = arith.constant 0 : i32
    %c0_i32_0 = arith.constant 0 : i32
    %c0_i32_1 = arith.constant 0 : i32
    return %arg0, %c0_i32, %c0_i32_0 : i32, i32, i32
  }
  func.func @transform_3(%arg0: i32) -> (i32, i32, i32) {
    %c0_i32 = arith.constant 0 : i32
    %c0_i32_0 = arith.constant 0 : i32
    %c0_i32_1 = arith.constant 0 : i32
    return %arg0, %c0_i32, %c0_i32_0 : i32, i32, i32
  }
}

</mosaic_0001>

<llo_original>
// kernel: tpu_custom_call.1
$region0: #{tpu_custom_call.1}
  #allocation0 [shape = 'u32[]', space=smem, size = 0x4, offset = 0x4, fixed_abs, tag = 'smem constant byte address 0x4 - core index']
  #allocation1 [shape = 'u32[72,128]{1,0:T(1,128)}', space=vmem, size = 0x9000, scoped, tag = 'internal scratch']
  %s0 = inlined_call_operand.vmem [shape: f32[16,8], index: 0, kind: input, shape index: {}]
  %s1 = inlined_call_operand.vmem [shape: f32[16,12], index: 1, kind: input, shape index: {}]
  %s2 = inlined_call_operand.vmem [shape: f32[24,16,16], index: 2, kind: input, shape index: {}]
  %s3 = inlined_call_operand.vmem [shape: f32[24,8,12], index: 3, kind: output, shape index: {}]
  %s4 = sld [smem:[#allocation0]]
  $region45: #{tpu_custom_call.1} parent=0
    _
  %s6 = ssub.s32 1, %s4
  %s7 = scalar_select 0, %s6, %s4
  loop: start=0, step=1, limit=6
  $region2: #{tpu_custom_call.1} parent=0 // loop_pre_header
    _
  $region3: #{tpu_custom_call.1} parent=0 // loop_header
    %s9 = sphi 0, %s13
    %p10 = scmp.ge.s32.totalorder %s9, 6
    %s17 = sphi 0, %s17
    %s19 = sphi 0, %s17
    %s20 = sphi 0, %s19
    %s34 = sphi 0, %s20
    %s38 = sphi 0, %s38
    %s40 = sphi 0, %s38
    %s41 = sphi 0, %s40
    %s55 = sphi 0, %s41
    %s61 = sphi 0, %s63
    %s64 = sphi 0, %s61
    %s65 = sphi 0, %s64
    %s81 = sphi 0, %s65
    %s87 = sphi 0, %s89
    %s90 = sphi 0, %s87
    %s91 = sphi 0, %s90
    %s107 = sphi 0, %s91
  $region4: #{tpu_custom_call.1} parent=0 // loop_header_branch
    %12 = sbr.rel (%p10) target = $region8
  $region5: #{tpu_custom_call.1} parent=0 // loop_body
    %s14 = ssub.s32 %s9, 1
    %s15 = ssub.s32 %s9, 2
    %s16 = sadd.s32 %s9, 1
    %s18 = sadd.s32 %s17, 1
    %p21 = scmp.eq.s32.totalorder %s9, 3
    %p22 = scmp.ne.s32.totalorder %s17, %s19
    %p23 = scmp.eq.s32.totalorder %s9, 0
    %p24 = por %p22, %p23
    %p25 = scmp.ne.s32.totalorder %s17, %s19
    %p26 = scmp.eq.s32.totalorder %s14, 3
    %p27 = por %p25, %p26
    %p28 = scmp.ne.s32.totalorder %s19, %s20
    %p29 = scmp.eq.s32.totalorder %s14, 0
    %p30 = por %p28, %p29
    %p31 = scmp.ne.s32.totalorder %s19, %s20
    %p32 = scmp.eq.s32.totalorder %s15, 3
    %p33 = por %p31, %p32
    %p35 = scmp.ne.s32.totalorder %s20, %s34
    %p36 = scmp.eq.s32.totalorder %s15, 0
    %p37 = por %p35, %p36
    %s39 = sadd.s32 %s38, 1
    %p42 = scmp.eq.s32.totalorder %s9, 3
    %p43 = scmp.ne.s32.totalorder %s38, %s40
    %p44 = scmp.eq.s32.totalorder %s9, 0
    %p45 = por %p43, %p44
    %p46 = scmp.ne.s32.totalorder %s38, %s40
    %p47 = scmp.eq.s32.totalorder %s14, 3
    %p48 = por %p46, %p47
    %p49 = scmp.ne.s32.totalorder %s40, %s41
    %p50 = scmp.eq.s32.totalorder %s14, 0
    %p51 = por %p49, %p50
    %p52 = scmp.ne.s32.totalorder %s40, %s41
    %p53 = scmp.eq.s32.totalorder %s15, 3
    %p54 = por %p52, %p53
    %p56 = scmp.ne.s32.totalorder %s41, %s55
    %p57 = scmp.eq.s32.totalorder %s15, 0
    %p58 = por %p56, %p57
    %s59 = ssub.s32 %s9, %s16
    %p60 = scmp.eq.s32.totalorder %s59, 0
    %s62 = sadd.s32 %s61, 1
    %s63 = scalar_select %p60, %s61, %s62
    %p66 = pneg %p60
    %p67 = scmp.eq.s32.totalorder %s9, 3
    %p68 = por %p66, %p67
    %p69 = scmp.ne.s32.totalorder %s61, %s64
    %p70 = scmp.eq.s32.totalorder %s9, 0
    %p71 = por %p69, %p70
    %p72 = scmp.ne.s32.totalorder %s61, %s64
    %p73 = scmp.eq.s32.totalorder %s14, 3
    %p74 = por %p72, %p73
    %p75 = scmp.ne.s32.totalorder %s64, %s65
    %p76 = scmp.eq.s32.totalorder %s14, 0
    %p77 = por %p75, %p76
    %p78 = scmp.ne.s32.totalorder %s64, %s65
    %p79 = scmp.eq.s32.totalorder %s15, 3
    %p80 = por %p78, %p79
    %p82 = scmp.ne.s32.totalorder %s65, %s81
    %p83 = scmp.eq.s32.totalorder %s15, 0
    %p84 = por %p82, %p83
    %s85 = ssub.s32 %s9, %s16
    %p86 = scmp.eq.s32.totalorder %s85, 0
    %s88 = sadd.s32 %s87, 1
    %s89 = scalar_select %p86, %s87, %s88
    %p92 = pneg %p86
    %p93 = scmp.eq.s32.totalorder %s9, 3
    %p94 = por %p92, %p93
    %p95 = scmp.ne.s32.totalorder %s87, %s90
    %p96 = scmp.eq.s32.totalorder %s9, 0
    %p97 = por %p95, %p96
    %p98 = scmp.ne.s32.totalorder %s87, %s90
    %p99 = scmp.eq.s32.totalorder %s14, 3
    %p100 = por %p98, %p99
    %p101 = scmp.ne.s32.totalorder %s90, %s91
    %p102 = scmp.eq.s32.totalorder %s14, 0
    %p103 = por %p101, %p102
    %p104 = scmp.ne.s32.totalorder %s90, %s91
    %p105 = scmp.eq.s32.totalorder %s15, 3
    %p106 = por %p104, %p105
    %p108 = scmp.ne.s32.totalorder %s91, %s107
    %p109 = scmp.eq.s32.totalorder %s15, 0
    %p110 = por %p108, %p109
    %p111 = scmp.le.s32.totalorder 1, %s9
    %p112 = scmp.lt.s32.totalorder %s9, 5
    %p113 = pnand %p111, %p112
    %p114 = pneg %p113
    // Predicated region
    $region9: #{tpu_custom_call.1} parent=5 // pred_check
      _
    $region10: #{tpu_custom_call.1} parent=5 // pred_check_branch
      %116 = sbr.rel (%p113) target = $region12
    $region11: #{tpu_custom_call.1} parent=5 // pred_region
      %s117 = ssub.s32 %s9, 1
      // Predicated region
      $region13: #{tpu_custom_call.1} parent=11 // pred_check
        %p118 = pneg %p30
      $region14: #{tpu_custom_call.1} parent=11 // pred_check_branch
        %120 = sbr.rel (%p118) target = $region16
      $region15: #{tpu_custom_call.1} parent=11 // pred_region
        _
      $region16: #{tpu_custom_call.1} parent=11 // pred_fallthru
        _
      // Predicated region
      $region17: #{tpu_custom_call.1} parent=11 // pred_check
        %p121 = pneg %p51
      $region18: #{tpu_custom_call.1} parent=11 // pred_check_branch
        %123 = sbr.rel (%p121) target = $region20
      $region19: #{tpu_custom_call.1} parent=11 // pred_region
        _
      $region20: #{tpu_custom_call.1} parent=11 // pred_fallthru
        _
    $region12: #{tpu_custom_call.1} parent=5 // pred_fallthru
      _
    %p124 = scmp.lt.s32.totalorder %s9, 4
    // Predicated region
    $region21: #{tpu_custom_call.1} parent=5 // pred_check
      %p125 = pneg %p124
    $region22: #{tpu_custom_call.1} parent=5 // pred_check_branch
      %127 = sbr.rel (%p125) target = $region24
    $region23: #{tpu_custom_call.1} parent=5 // pred_region
      // Predicated region
      $region25: #{tpu_custom_call.1} parent=23 // pred_check
        %p128 = pneg %p71
      $region26: #{tpu_custom_call.1} parent=23 // pred_check_branch
        %130 = sbr.rel (%p128) target = $region28
      $region27: #{tpu_custom_call.1} parent=23 // pred_region
        %s131 = smul.u32 6, %s9
        %p132 = scmp.lt.s32.totalorder %s131, 23
        %s133 = scalar_select %p132, %s131, 23
        %s134 = smul.addr %s133, 2
        %s135 = smul.addr %s134, 8
        %s136 = scalar_lea.vmem %s2, %s135
        %s137 = smul.u32 6, %s9
      $region28: #{tpu_custom_call.1} parent=23 // pred_fallthru
        _
    $region24: #{tpu_custom_call.1} parent=5 // pred_fallthru
      _
    %p138 = scmp.le.s32.totalorder 1, %s9
    %p139 = scmp.lt.s32.totalorder %s9, 5
    %p140 = pnand %p138, %p139
    %p141 = pneg %p140
    // Predicated region
    $region29: #{tpu_custom_call.1} parent=5 // pred_check
      _
    $region30: #{tpu_custom_call.1} parent=5 // pred_check_branch
      %143 = sbr.rel (%p140) target = $region32
    $region31: #{tpu_custom_call.1} parent=5 // pred_region
      %s144 = ssub.s32 %s9, 1
      %p145 = pneg %p30
      %p146 = pneg %p27
      %p147 = pneg %p51
      %p148 = pneg %p48
      %s149 = smul.u32 6, %s14
      %p150 = scmp.lt.s32.totalorder %s149, 23
      %s151 = scalar_select %p150, %s149, 23
      %s152 = smul.addr %s151, 2
      %s153 = smul.addr %s152, 8
      %s154 = scalar_lea.vmem %s2, %s153
      %p155 = pneg %p77
      %p156 = pneg %p74
      %p157 = pneg %p103
      %p158 = pneg %p100
      %s159 = smul.u32 6, %s14
      %p160 = scmp.lt.s32.totalorder %s159, 23
      %s161 = scalar_select %p160, %s159, 23
      %s162 = smul.addr %s161, 8
      %s163 = scalar_lea.vmem %s3, %s162
      %s164 = smul.u32 6, %s14
      %p165 = scmp.lt.s32.totalorder %s164, 23
      %s166 = scalar_select %p165, %s164, 23
      %s167 = smul.addr %s166, 2
      %s168 = smul.addr %s167, 8
      %s169 = scalar_lea.vmem %s2, %s168
      %s170 = smul.u32 6, %s14
      %s171 = smul.u32 6, %s14
      %p172 = scmp.lt.s32.totalorder %s171, 23
      %s173 = scalar_select %p172, %s171, 23
      %s174 = smul.addr %s173, 8
      %s175 = scalar_lea.vmem %s3, %s174
      %s176 = smul.u32 6, %s14
      %v177 = vld [vmem:[%s169] sm:$0xff]
      %v178 = vld [vmem:[%s169 + $0x8] sm:$0xff]
      %v179 = vld [vmem:[%s169 + $0x10] sm:$0xff]
      %v180 = vld [vmem:[%s169 + $0x18] sm:$0xff]
      %v181 = vld [vmem:[%s169 + $0x20] sm:$0xff]
      %v182 = vld [vmem:[%s169 + $0x28] sm:$0xff]
      %v183 = vld [vmem:[%s169 + $0x30] sm:$0xff]
      %v184 = vld [vmem:[%s169 + $0x38] sm:$0xff]
      %v185 = vld [vmem:[%s169 + $0x40] sm:$0xff]
      %v186 = vld [vmem:[%s169 + $0x48] sm:$0xff]
      %v187 = vld [vmem:[%s169 + $0x50] sm:$0xff]
      %v188 = vld [vmem:[%s169 + $0x58] sm:$0xff]
      %v189 = vld [vmem:[%s0] sm:$0xff]
      %v190 = vld [vmem:[%s0 + $0x8] sm:$0xff]
      %v191 = vld [vmem:[%s1] sm:$0xff]
      %v192 = vld [vmem:[%s1 + $0x8] sm:$0xff]
      %193 = vxpose.xlu0.b32.start [1/16] %v177, 128
      %194 = vxpose.xlu0.b32.cont [2/16] %v178, 128
      %195 = vxpose.xlu0.b32.cont [3/16] 0.0, 128
      %196 = vxpose.xlu0.b32.cont [4/16] 0.0, 128
      %197 = vxpose.xlu0.b32.cont [5/16] 0.0, 128
      %198 = vxpose.xlu0.b32.cont [6/16] 0.0, 128
      %199 = vxpose.xlu0.b32.cont [7/16] 0.0, 128
      %200 = vxpose.xlu0.b32.cont [8/16] 0.0, 128
      %201 = vxpose.xlu0.b32.cont [9/16] 0.0, 128
      %202 = vxpose.xlu0.b32.cont [10/16] 0.0, 128
      %203 = vxpose.xlu0.b32.cont [11/16] 0.0, 128
      %204 = vxpose.xlu0.b32.cont [12/16] 0.0, 128
      %205 = vxpose.xlu0.b32.cont [13/16] 0.0, 128
      %206 = vxpose.xlu0.b32.cont [14/16] 0.0, 128
      %207 = vxpose.xlu0.b32.cont [15/16] 0.0, 128
      %208 = vxpose.xlu0.b32.end [16/16] 0.0, 128
      %v209 = vpop.trf.xlu0
      %v210 = vpop.trf.xlu0
      %v211 = vpop.trf.xlu0
      %v212 = vpop.trf.xlu0
      %v213 = vpop.trf.xlu0
      %v214 = vpop.trf.xlu0
      %v215 = vpop.trf.xlu0
      %v216 = vpop.trf.xlu0
      %v217 = vpop.trf.xlu0
      %v218 = vpop.trf.xlu0
      %v219 = vpop.trf.xlu0
      %v220 = vpop.trf.xlu0
      %v221 = vpop.trf.xlu0
      %v222 = vpop.trf.xlu0
      %v223 = vpop.trf.xlu0
      %v224 = vpop.trf.xlu0
      %225 = vxpose.xlu0.b32.start [1/16] %v179, 128
      %226 = vxpose.xlu0.b32.cont [2/16] %v180, 128
      %227 = vxpose.xlu0.b32.cont [3/16] 0.0, 128
      %228 = vxpose.xlu0.b32.cont [4/16] 0.0, 128
      %229 = vxpose.xlu0.b32.cont [5/16] 0.0, 128
      %230 = vxpose.xlu0.b32.cont [6/16] 0.0, 128
      %231 = vxpose.xlu0.b32.cont [7/16] 0.0, 128
      %232 = vxpose.xlu0.b32.cont [8/16] 0.0, 128
      %233 = vxpose.xlu0.b32.cont [9/16] 0.0, 128
      %234 = vxpose.xlu0.b32.cont [10/16] 0.0, 128
      %235 = vxpose.xlu0.b32.cont [11/16] 0.0, 128
      %236 = vxpose.xlu0.b32.cont [12/16] 0.0, 128
      %237 = vxpose.xlu0.b32.cont [13/16] 0.0, 128
      %238 = vxpose.xlu0.b32.cont [14/16] 0.0, 128
      %239 = vxpose.xlu0.b32.cont [15/16] 0.0, 128
      %240 = vxpose.xlu0.b32.end [16/16] 0.0, 128
      %v241 = vpop.trf.xlu0
      %v242 = vpop.trf.xlu0
      %v243 = vpop.trf.xlu0
      %v244 = vpop.trf.xlu0
      %v245 = vpop.trf.xlu0
      %v246 = vpop.trf.xlu0
      %v247 = vpop.trf.xlu0
      %v248 = vpop.trf.xlu0
      %v249 = vpop.trf.xlu0
      %v250 = vpop.trf.xlu0
      %v251 = vpop.trf.xlu0
      %v252 = vpop.trf.xlu0
      %v253 = vpop.trf.xlu0
      %v254 = vpop.trf.xlu0
      %v255 = vpop.trf.xlu0
      %v256 = vpop.trf.xlu0
      %257 = vxpose.xlu0.b32.start [1/16] %v181, 128
      %258 = vxpose.xlu0.b32.cont [2/16] %v182, 128
      %259 = vxpose.xlu0.b32.cont [3/16] 0.0, 128
      %260 = vxpose.xlu0.b32.cont [4/16] 0.0, 128
      %261 = vxpose.xlu0.b32.cont [5/16] 0.0, 128
      %262 = vxpose.xlu0.b32.cont [6/16] 0.0, 128
      %263 = vxpose.xlu0.b32.cont [7/16] 0.0, 128
      %264 = vxpose.xlu0.b32.cont [8/16] 0.0, 128
      %265 = vxpose.xlu0.b32.cont [9/16] 0.0, 128
      %266 = vxpose.xlu0.b32.cont [10/16] 0.0, 128
      %267 = vxpose.xlu0.b32.cont [11/16] 0.0, 128
      %268 = vxpose.xlu0.b32.cont [12/16] 0.0, 128
      %269 = vxpose.xlu0.b32.cont [13/16] 0.0, 128
      %270 = vxpose.xlu0.b32.cont [14/16] 0.0, 128
      %271 = vxpose.xlu0.b32.cont [15/16] 0.0, 128
      %272 = vxpose.xlu0.b32.end [16/16] 0.0, 128
      %v273 = vpop.trf.xlu0
      %v274 = vpop.trf.xlu0
      %v275 = vpop.trf.xlu0
      %v276 = vpop.trf.xlu0
      %v277 = vpop.trf.xlu0
      %v278 = vpop.trf.xlu0
      %v279 = vpop.trf.xlu0
      %v280 = vpop.trf.xlu0
      %v281 = vpop.trf.xlu0
      %v282 = vpop.trf.xlu0
      %v283 = vpop.trf.xlu0
      %v284 = vpop.trf.xlu0
      %v285 = vpop.trf.xlu0
      %v286 = vpop.trf.xlu0
      %v287 = vpop.trf.xlu0
      %v288 = vpop.trf.xlu0
      %289 = vxpose.xlu0.b32.start [1/16] %v183, 128
      %290 = vxpose.xlu0.b32.cont [2/16] %v184, 128
      %291 = vxpose.xlu0.b32.cont [3/16] 0.0, 128
      %292 = vxpose.xlu0.b32.cont [4/16] 0.0, 128
      %293 = vxpose.xlu0.b32.cont [5/16] 0.0, 128
      %294 = vxpose.xlu0.b32.cont [6/16] 0.0, 128
      %295 = vxpose.xlu0.b32.cont [7/16] 0.0, 128
      %296 = vxpose.xlu0.b32.cont [8/16] 0.0, 128
      %297 = vxpose.xlu0.b32.cont [9/16] 0.0, 128
      %298 = vxpose.xlu0.b32.cont [10/16] 0.0, 128
      %299 = vxpose.xlu0.b32.cont [11/16] 0.0, 128
      %300 = vxpose.xlu0.b32.cont [12/16] 0.0, 128
      %301 = vxpose.xlu0.b32.cont [13/16] 0.0, 128
      %302 = vxpose.xlu0.b32.cont [14/16] 0.0, 128
      %303 = vxpose.xlu0.b32.cont [15/16] 0.0, 128
      %304 = vxpose.xlu0.b32.end [16/16] 0.0, 128
      %v305 = vpop.trf.xlu0
      %v306 = vpop.trf.xlu0
      %v307 = vpop.trf.xlu0
      %v308 = vpop.trf.xlu0
      %v309 = vpop.trf.xlu0
      %v310 = vpop.trf.xlu0
      %v311 = vpop.trf.xlu0
      %v312 = vpop.trf.xlu0
      %v313 = vpop.trf.xlu0
      %v314 = vpop.trf.xlu0
      %v315 = vpop.trf.xlu0
      %v316 = vpop.trf.xlu0
      %v317 = vpop.trf.xlu0
      %v318 = vpop.trf.xlu0
      %v319 = vpop.trf.xlu0
      %v320 = vpop.trf.xlu0
      %321 = vxpose.xlu0.b32.start [1/16] %v185, 128
      %322 = vxpose.xlu0.b32.cont [2/16] %v186, 128
      %323 = vxpose.xlu0.b32.cont [3/16] 0.0, 128
      %324 = vxpose.xlu0.b32.cont [4/16] 0.0, 128
      %325 = vxpose.xlu0.b32.cont [5/16] 0.0, 128
      %326 = vxpose.xlu0.b32.cont [6/16] 0.0, 128
      %327 = vxpose.xlu0.b32.cont [7/16] 0.0, 128
      %328 = vxpose.xlu0.b32.cont [8/16] 0.0, 128
      %329 = vxpose.xlu0.b32.cont [9/16] 0.0, 128
      %330 = vxpose.xlu0.b32.cont [10/16] 0.0, 128
      %331 = vxpose.xlu0.b32.cont [11/16] 0.0, 128
      %332 = vxpose.xlu0.b32.cont [12/16] 0.0, 128
      %333 = vxpose.xlu0.b32.cont [13/16] 0.0, 128
      %334 = vxpose.xlu0.b32.cont [14/16] 0.0, 128
      %335 = vxpose.xlu0.b32.cont [15/16] 0.0, 128
      %336 = vxpose.xlu0.b32.end [16/16] 0.0, 128
      %v337 = vpop.trf.xlu0
      %v338 = vpop.trf.xlu0
      %v339 = vpop.trf.xlu0
      %v340 = vpop.trf.xlu0
      %v341 = vpop.trf.xlu0
      %v342 = vpop.trf.xlu0
      %v343 = vpop.trf.xlu0
      %v344 = vpop.trf.xlu0
      %v345 = vpop.trf.xlu0
      %v346 = vpop.trf.xlu0
      %v347 = vpop.trf.xlu0
      %v348 = vpop.trf.xlu0
      %v349 = vpop.trf.xlu0
      %v350 = vpop.trf.xlu0
      %v351 = vpop.trf.xlu0
      %v352 = vpop.trf.xlu0
      %353 = vxpose.xlu0.b32.start [1/16] %v187, 128
      %354 = vxpose.xlu0.b32.cont [2/16] %v188, 128
      %355 = vxpose.xlu0.b32.cont [3/16] 0.0, 128
      %356 = vxpose.xlu0.b32.cont [4/16] 0.0, 128
      %357 = vxpose.xlu0.b32.cont [5/16] 0.0, 128
      %358 = vxpose.xlu0.b32.cont [6/16] 0.0, 128
      %359 = vxpose.xlu0.b32.cont [7/16] 0.0, 128
      %360 = vxpose.xlu0.b32.cont [8/16] 0.0, 128
      %361 = vxpose.xlu0.b32.cont [9/16] 0.0, 128
      %362 = vxpose.xlu0.b32.cont [10/16] 0.0, 128
      %363 = vxpose.xlu0.b32.cont [11/16] 0.0, 128
      %364 = vxpose.xlu0.b32.cont [12/16] 0.0, 128
      %365 = vxpose.xlu0.b32.cont [13/16] 0.0, 128
      %366 = vxpose.xlu0.b32.cont [14/16] 0.0, 128
      %367 = vxpose.xlu0.b32.cont [15/16] 0.0, 128
      %368 = vxpose.xlu0.b32.end [16/16] 0.0, 128
      %v369 = vpop.trf.xlu0
      %v370 = vpop.trf.xlu0
      %v371 = vpop.trf.xlu0
      %v372 = vpop.trf.xlu0
      %v373 = vpop.trf.xlu0
      %v374 = vpop.trf.xlu0
      %v375 = vpop.trf.xlu0
      %v376 = vpop.trf.xlu0
      %v377 = vpop.trf.xlu0
      %v378 = vpop.trf.xlu0
      %v379 = vpop.trf.xlu0
      %v380 = vpop.trf.xlu0
      %v381 = vpop.trf.xlu0
      %v382 = vpop.trf.xlu0
      %v383 = vpop.trf.xlu0
      %v384 = vpop.trf.xlu0
      %vm385 = vcmask 130048
      %v387 = vsel %vm385, %v209, 0
      %v390 = vsel %vm385, %v210, 0
      %v393 = vsel %vm385, %v241, 0
      %v396 = vsel %vm385, %v242, 0
      %v399 = vsel %vm385, %v273, 0
      %v402 = vsel %vm385, %v274, 0
      %v405 = vsel %vm385, %v305, 0
      %v408 = vsel %vm385, %v306, 0
      %v411 = vsel %vm385, %v337, 0
      %v414 = vsel %vm385, %v338, 0
      %v417 = vsel %vm385, %v369, 0
      %v420 = vsel %vm385, %v370, 0
      %422 = vmatpush.msra.mxu0 0.0
      %423 = vmatpush.msra.mxu0 0.0
      %424 = vmatpush.msra.mxu0 0.0
      %425 = vmatpush.msra.mxu0 0.0
      %426 = vmatpush.msra.mxu0 0.0
      %427 = vmatpush.msra.mxu0 0.0
      %428 = vmatpush.msra.mxu0 0.0
      %429 = vmatpush.msra.mxu0 0.0
      %430 = vmatpush.msra.mxu0 0.0
      %431 = vmatpush.msra.mxu0 0.0
      %432 = vmatpush.msra.mxu0 0.0
      %433 = vmatpush.msra.mxu0 0.0
      %434 = vmatpush.msra.mxu0 0.0
      %435 = vmatpush.msra.mxu0 0.0
      %436 = vmatpush.msra.mxu0 %v190
      %437 = vmatpush.msra.mxu0 %v189
      %438 = vmatmul.f32.gmra.mxu0 %v387
      %v439 = vpop.f32.mrf.mxu0
      %v440 = vadd.f32 0.0, %v439
      %441 = vmatmul.f32.gmra.mxu0 %v390
      %v442 = vpop.f32.mrf.mxu0
      %v443 = vadd.f32 0.0, %v442
      %444 = vmatmul.f32.gmra.mxu0 %v393
      %v445 = vpop.f32.mrf.mxu0
      %v446 = vadd.f32 0.0, %v445
      %447 = vmatmul.f32.gmra.mxu0 %v396
      %v448 = vpop.f32.mrf.mxu0
      %v449 = vadd.f32 0.0, %v448
      %450 = vmatmul.f32.gmra.mxu0 %v399
      %v451 = vpop.f32.mrf.mxu0
      %v452 = vadd.f32 0.0, %v451
      %453 = vmatmul.f32.gmra.mxu0 %v402
      %v454 = vpop.f32.mrf.mxu0
      %v455 = vadd.f32 0.0, %v454
      %456 = vmatmul.f32.gmra.mxu0 %v405
      %v457 = vpop.f32.mrf.mxu0
      %v458 = vadd.f32 0.0, %v457
      %459 = vmatmul.f32.gmra.mxu0 %v408
      %v460 = vpop.f32.mrf.mxu0
      %v461 = vadd.f32 0.0, %v460
      %462 = vmatmul.f32.gmra.mxu0 %v411
      %v463 = vpop.f32.mrf.mxu0
      %v464 = vadd.f32 0.0, %v463
      %465 = vmatmul.f32.gmra.mxu0 %v414
      %v466 = vpop.f32.mrf.mxu0
      %v467 = vadd.f32 0.0, %v466
      %468 = vmatmul.f32.gmra.mxu0 %v417
      %v469 = vpop.f32.mrf.mxu0
      %v470 = vadd.f32 0.0, %v469
      %471 = vmatmul.f32.gmra.mxu0 %v420
      %v472 = vpop.f32.mrf.mxu0
      %v473 = vadd.f32 0.0, %v472
      %474 = vdwg.mxu0
      %475 = vxpose.xlu0.b32.start [1/16] %v440, 128
      %476 = vxpose.xlu0.b32.cont [2/16] %v443, 128
      %477 = vxpose.xlu0.b32.cont [3/16] 0.0, 128
      %478 = vxpose.xlu0.b32.cont [4/16] 0.0, 128
      %479 = vxpose.xlu0.b32.cont [5/16] 0.0, 128
      %480 = vxpose.xlu0.b32.cont [6/16] 0.0, 128
      %481 = vxpose.xlu0.b32.cont [7/16] 0.0, 128
      %482 = vxpose.xlu0.b32.cont [8/16] 0.0, 128
      %483 = vxpose.xlu0.b32.cont [9/16] 0.0, 128
      %484 = vxpose.xlu0.b32.cont [10/16] 0.0, 128
      %485 = vxpose.xlu0.b32.cont [11/16] 0.0, 128
      %486 = vxpose.xlu0.b32.cont [12/16] 0.0, 128
      %487 = vxpose.xlu0.b32.cont [13/16] 0.0, 128
      %488 = vxpose.xlu0.b32.cont [14/16] 0.0, 128
      %489 = vxpose.xlu0.b32.cont [15/16] 0.0, 128
      %490 = vxpose.xlu0.b32.end [16/16] 0.0, 128
      %v491 = vpop.trf.xlu0
      %v492 = vpop.trf.xlu0
      %v493 = vpop.trf.xlu0
      %v494 = vpop.trf.xlu0
      %v495 = vpop.trf.xlu0
      %v496 = vpop.trf.xlu0
      %v497 = vpop.trf.xlu0
      %v498 = vpop.trf.xlu0
      %v499 = vpop.trf.xlu0
      %v500 = vpop.trf.xlu0
      %v501 = vpop.trf.xlu0
      %v502 = vpop.trf.xlu0
      %v503 = vpop.trf.xlu0
      %v504 = vpop.trf.xlu0
      %v505 = vpop.trf.xlu0
      %v506 = vpop.trf.xlu0
      %507 = vxpose.xlu0.b32.start [1/16] %v446, 128
      %508 = vxpose.xlu0.b32.cont [2/16] %v449, 128
      %509 = vxpose.xlu0.b32.cont [3/16] 0.0, 128
      %510 = vxpose.xlu0.b32.cont [4/16] 0.0, 128
      %511 = vxpose.xlu0.b32.cont [5/16] 0.0, 128
      %512 = vxpose.xlu0.b32.cont [6/16] 0.0, 128
      %513 = vxpose.xlu0.b32.cont [7/16] 0.0, 128
      %514 = vxpose.xlu0.b32.cont [8/16] 0.0, 128
      %515 = vxpose.xlu0.b32.cont [9/16] 0.0, 128
      %516 = vxpose.xlu0.b32.cont [10/16] 0.0, 128
      %517 = vxpose.xlu0.b32.cont [11/16] 0.0, 128
      %518 = vxpose.xlu0.b32.cont [12/16] 0.0, 128
      %519 = vxpose.xlu0.b32.cont [13/16] 0.0, 128
      %520 = vxpose.xlu0.b32.cont [14/16] 0.0, 128
      %521 = vxpose.xlu0.b32.cont [15/16] 0.0, 128
      %522 = vxpose.xlu0.b32.end [16/16] 0.0, 128
      %v523 = vpop.trf.xlu0
      %v524 = vpop.trf.xlu0
      %v525 = vpop.trf.xlu0
      %v526 = vpop.trf.xlu0
      %v527 = vpop.trf.xlu0
      %v528 = vpop.trf.xlu0
      %v529 = vpop.trf.xlu0
      %v530 = vpop.trf.xlu0
      %v531 = vpop.trf.xlu0
      %v532 = vpop.trf.xlu0
      %v533 = vpop.trf.xlu0
      %v534 = vpop.trf.xlu0
      %v535 = vpop.trf.xlu0
      %v536 = vpop.trf.xlu0
      %v537 = vpop.trf.xlu0
      %v538 = vpop.trf.xlu0
      %539 = vxpose.xlu0.b32.start [1/16] %v452, 128
      %540 = vxpose.xlu0.b32.cont [2/16] %v455, 128
      %541 = vxpose.xlu0.b32.cont [3/16] 0.0, 128
      %542 = vxpose.xlu0.b32.cont [4/16] 0.0, 128
      %543 = vxpose.xlu0.b32.cont [5/16] 0.0, 128
      %544 = vxpose.xlu0.b32.cont [6/16] 0.0, 128
      %545 = vxpose.xlu0.b32.cont [7/16] 0.0, 128
      %546 = vxpose.xlu0.b32.cont [8/16] 0.0, 128
      %547 = vxpose.xlu0.b32.cont [9/16] 0.0, 128
      %548 = vxpose.xlu0.b32.cont [10/16] 0.0, 128
      %549 = vxpose.xlu0.b32.cont [11/16] 0.0, 128
      %550 = vxpose.xlu0.b32.cont [12/16] 0.0, 128
      %551 = vxpose.xlu0.b32.cont [13/16] 0.0, 128
      %552 = vxpose.xlu0.b32.cont [14/16] 0.0, 128
      %553 = vxpose.xlu0.b32.cont [15/16] 0.0, 128
      %554 = vxpose.xlu0.b32.end [16/16] 0.0, 128
      %v555 = vpop.trf.xlu0
      %v556 = vpop.trf.xlu0
      %v557 = vpop.trf.xlu0
      %v558 = vpop.trf.xlu0
      %v559 = vpop.trf.xlu0
      %v560 = vpop.trf.xlu0
      %v561 = vpop.trf.xlu0
      %v562 = vpop.trf.xlu0
      %v563 = vpop.trf.xlu0
      %v564 = vpop.trf.xlu0
      %v565 = vpop.trf.xlu0
      %v566 = vpop.trf.xlu0
      %v567 = vpop.trf.xlu0
      %v568 = vpop.trf.xlu0
      %v569 = vpop.trf.xlu0
      %v570 = vpop.trf.xlu0
      %571 = vxpose.xlu0.b32.start [1/16] %v458, 128
      %572 = vxpose.xlu0.b32.cont [2/16] %v461, 128
      %573 = vxpose.xlu0.b32.cont [3/16] 0.0, 128
      %574 = vxpose.xlu0.b32.cont [4/16] 0.0, 128
      %575 = vxpose.xlu0.b32.cont [5/16] 0.0, 128
      %576 = vxpose.xlu0.b32.cont [6/16] 0.0, 128
      %577 = vxpose.xlu0.b32.cont [7/16] 0.0, 128
      %578 = vxpose.xlu0.b32.cont [8/16] 0.0, 128
      %579 = vxpose.xlu0.b32.cont [9/16] 0.0, 128
      %580 = vxpose.xlu0.b32.cont [10/16] 0.0, 128
      %581 = vxpose.xlu0.b32.cont [11/16] 0.0, 128
      %582 = vxpose.xlu0.b32.cont [12/16] 0.0, 128
      %583 = vxpose.xlu0.b32.cont [13/16] 0.0, 128
      %584 = vxpose.xlu0.b32.cont [14/16] 0.0, 128
      %585 = vxpose.xlu0.b32.cont [15/16] 0.0, 128
      %586 = vxpose.xlu0.b32.end [16/16] 0.0, 128
      %v587 = vpop.trf.xlu0
      %v588 = vpop.trf.xlu0
      %v589 = vpop.trf.xlu0
      %v590 = vpop.trf.xlu0
      %v591 = vpop.trf.xlu0
      %v592 = vpop.trf.xlu0
      %v593 = vpop.trf.xlu0
      %v594 = vpop.trf.xlu0
      %v595 = vpop.trf.xlu0
      %v596 = vpop.trf.xlu0
      %v597 = vpop.trf.xlu0
      %v598 = vpop.trf.xlu0
      %v599 = vpop.trf.xlu0
      %v600 = vpop.trf.xlu0
      %v601 = vpop.trf.xlu0
      %v602 = vpop.trf.xlu0
      %603 = vxpose.xlu0.b32.start [1/16] %v464, 128
      %604 = vxpose.xlu0.b32.cont [2/16] %v467, 128
      %605 = vxpose.xlu0.b32.cont [3/16] 0.0, 128
      %606 = vxpose.xlu0.b32.cont [4/16] 0.0, 128
      %607 = vxpose.xlu0.b32.cont [5/16] 0.0, 128
      %608 = vxpose.xlu0.b32.cont [6/16] 0.0, 128
      %609 = vxpose.xlu0.b32.cont [7/16] 0.0, 128
      %610 = vxpose.xlu0.b32.cont [8/16] 0.0, 128
      %611 = vxpose.xlu0.b32.cont [9/16] 0.0, 128
      %612 = vxpose.xlu0.b32.cont [10/16] 0.0, 128
      %613 = vxpose.xlu0.b32.cont [11/16] 0.0, 128
      %614 = vxpose.xlu0.b32.cont [12/16] 0.0, 128
      %615 = vxpose.xlu0.b32.cont [13/16] 0.0, 128
      %616 = vxpose.xlu0.b32.cont [14/16] 0.0, 128
      %617 = vxpose.xlu0.b32.cont [15/16] 0.0, 128
      %618 = vxpose.xlu0.b32.end [16/16] 0.0, 128
      %v619 = vpop.trf.xlu0
      %v620 = vpop.trf.xlu0
      %v621 = vpop.trf.xlu0
      %v622 = vpop.trf.xlu0
      %v623 = vpop.trf.xlu0
      %v624 = vpop.trf.xlu0
      %v625 = vpop.trf.xlu0
      %v626 = vpop.trf.xlu0
      %v627 = vpop.trf.xlu0
      %v628 = vpop.trf.xlu0
      %v629 = vpop.trf.xlu0
      %v630 = vpop.trf.xlu0
      %v631 = vpop.trf.xlu0
      %v632 = vpop.trf.xlu0
      %v633 = vpop.trf.xlu0
      %v634 = vpop.trf.xlu0
      %635 = vxpose.xlu0.b32.start [1/16] %v470, 128
      %636 = vxpose.xlu0.b32.cont [2/16] %v473, 128
      %637 = vxpose.xlu0.b32.cont [3/16] 0.0, 128
      %638 = vxpose.xlu0.b32.cont [4/16] 0.0, 128
      %639 = vxpose.xlu0.b32.cont [5/16] 0.0, 128
      %640 = vxpose.xlu0.b32.cont [6/16] 0.0, 128
      %641 = vxpose.xlu0.b32.cont [7/16] 0.0, 128
      %642 = vxpose.xlu0.b32.cont [8/16] 0.0, 128
      %643 = vxpose.xlu0.b32.cont [9/16] 0.0, 128
      %644 = vxpose.xlu0.b32.cont [10/16] 0.0, 128
      %645 = vxpose.xlu0.b32.cont [11/16] 0.0, 128
      %646 = vxpose.xlu0.b32.cont [12/16] 0.0, 128
      %647 = vxpose.xlu0.b32.cont [13/16] 0.0, 128
      %648 = vxpose.xlu0.b32.cont [14/16] 0.0, 128
      %649 = vxpose.xlu0.b32.cont [15/16] 0.0, 128
      %650 = vxpose.xlu0.b32.end [16/16] 0.0, 128
      %v651 = vpop.trf.xlu0
      %v652 = vpop.trf.xlu0
      %v653 = vpop.trf.xlu0
      %v654 = vpop.trf.xlu0
      %v655 = vpop.trf.xlu0
      %v656 = vpop.trf.xlu0
      %v657 = vpop.trf.xlu0
      %v658 = vpop.trf.xlu0
      %v659 = vpop.trf.xlu0
      %v660 = vpop.trf.xlu0
      %v661 = vpop.trf.xlu0
      %v662 = vpop.trf.xlu0
      %v663 = vpop.trf.xlu0
      %v664 = vpop.trf.xlu0
      %v665 = vpop.trf.xlu0
      %v666 = vpop.trf.xlu0
      %v668 = vsel %vm385, %v491, 0
      %v671 = vsel %vm385, %v523, 0
      %v674 = vsel %vm385, %v555, 0
      %v677 = vsel %vm385, %v587, 0
      %v680 = vsel %vm385, %v619, 0
      %v683 = vsel %vm385, %v651, 0
      %685 = vmatpush.msra.mxu0 0.0
      %686 = vmatpush.msra.mxu0 0.0
      %687 = vmatpush.msra.mxu0 0.0
      %688 = vmatpush.msra.mxu0 0.0
      %689 = vmatpush.msra.mxu0 0.0
      %690 = vmatpush.msra.mxu0 0.0
      %691 = vmatpush.msra.mxu0 0.0
      %692 = vmatpush.msra.mxu0 0.0
      %693 = vmatpush.msra.mxu0 0.0
      %694 = vmatpush.msra.mxu0 0.0
      %695 = vmatpush.msra.mxu0 0.0
      %696 = vmatpush.msra.mxu0 0.0
      %697 = vmatpush.msra.mxu0 0.0
      %698 = vmatpush.msra.mxu0 0.0
      %699 = vmatpush.msra.mxu0 %v192
      %700 = vmatpush.msra.mxu0 %v191
      %701 = vmatmul.f32.gmra.mxu0 %v668
      %v702 = vpop.f32.mrf.mxu0
      %v703 = vadd.f32 0.0, %v702
      %704 = vmatmul.f32.gmra.mxu0 %v671
      %v705 = vpop.f32.mrf.mxu0
      %v706 = vadd.f32 0.0, %v705
      %707 = vmatmul.f32.gmra.mxu0 %v674
      %v708 = vpop.f32.mrf.mxu0
      %v709 = vadd.f32 0.0, %v708
      %710 = vmatmul.f32.gmra.mxu0 %v677
      %v711 = vpop.f32.mrf.mxu0
      %v712 = vadd.f32 0.0, %v711
      %713 = vmatmul.f32.gmra.mxu0 %v680
      %v714 = vpop.f32.mrf.mxu0
      %v715 = vadd.f32 0.0, %v714
      %716 = vmatmul.f32.gmra.mxu0 %v683
      %v717 = vpop.f32.mrf.mxu0
      %v718 = vadd.f32 0.0, %v717
      %719 = vdwg.mxu0
      %vm720 = vcmask 97280
      %721 = vst.msk [vmem:[%s175] sm:$0xff] %vm720, %v703
      %722 = vst.msk [vmem:[%s175 + $0x8] sm:$0xff] %vm720, %v706
      %723 = vst.msk [vmem:[%s175 + $0x10] sm:$0xff] %vm720, %v709
      %724 = vst.msk [vmem:[%s175 + $0x18] sm:$0xff] %vm720, %v712
      %725 = vst.msk [vmem:[%s175 + $0x20] sm:$0xff] %vm720, %v715
      %726 = vst.msk [vmem:[%s175 + $0x28] sm:$0xff] %vm720, %v718
      %s727 = smul.u32 6, %s14
      %p728 = scmp.lt.s32.totalorder %s727, 23
      %s729 = scalar_select %p728, %s727, 23
      %s730 = smul.addr %s729, 8
      %s731 = scalar_lea.vmem %s3, %s730
      // Predicated region
      $region33: #{tpu_custom_call.1} parent=31 // pred_check
        %p732 = pneg %p100
      $region34: #{tpu_custom_call.1} parent=31 // pred_check_branch
        %734 = sbr.rel (%p732) target = $region36
      $region35: #{tpu_custom_call.1} parent=31 // pred_region
        %s735 = smul.u32 6, %s14
      $region36: #{tpu_custom_call.1} parent=31 // pred_fallthru
        _
    $region32: #{tpu_custom_call.1} parent=5 // pred_fallthru
      _
    %p736 = scmp.le.s32.totalorder 2, %s9
    // Predicated region
    $region37: #{tpu_custom_call.1} parent=5 // pred_check
      %p737 = pneg %p736
    $region38: #{tpu_custom_call.1} parent=5 // pred_check_branch
      %739 = sbr.rel (%p737) target = $region40
    $region39: #{tpu_custom_call.1} parent=5 // pred_region
      %s740 = ssub.s32 %s9, 2
      // Predicated region
      $region41: #{tpu_custom_call.1} parent=39 // pred_check
        %p741 = pneg %p106
      $region42: #{tpu_custom_call.1} parent=39 // pred_check_branch
        %743 = sbr.rel (%p741) target = $region44
      $region43: #{tpu_custom_call.1} parent=39 // pred_region
        %s744 = smul.u32 6, %s15
        %p745 = scmp.lt.s32.totalorder %s744, 23
        %s746 = scalar_select %p745, %s744, 23
        %s747 = smul.addr %s746, 8
        %s748 = scalar_lea.vmem %s3, %s747
      $region44: #{tpu_custom_call.1} parent=39 // pred_fallthru
        _
    $region40: #{tpu_custom_call.1} parent=5 // pred_fallthru
      _
  $region6: #{tpu_custom_call.1} parent=0 // loop_footer
    %s13 = sadd.s32 1, %s9
  $region7: #{tpu_custom_call.1} parent=0 // loop_footer_branch
    %8 = sbr.rel target = $region3
  $region8: #{tpu_custom_call.1} parent=0 // loop_exit
    _

</llo_original>
